<compile_context>
chip_gen: v5e
topology: v5e:2x2
jax: 0.10.0
libtpu: 0.0.40
codegen_flags: <defaults>
</compile_context>

<pallas_src>
import jax
import jax.numpy as jnp
from jax import lax
from jax.experimental import pallas as pl
from jax.experimental.pallas import tpu as pltpu

# ---- problem sizes (small, consistent with the module) -----------------------
B = 2           # batch
C_IN = 4        # args.in_features
H = W = 16      # spatial
HW = H * W      # 256 -> lane axis
C_MID = 16      # simplified backbone stem width
DIM = 64        # args.dim == DSBN feature size (module hard-codes BN(64))
P1, P2 = 32, 32 # args.projector = "32-32"  -> sizes = [64, 32, 32]
EPS = 1e-5      # BatchNorm eps (PyTorch default)

# ---- packed parameter slab: one [64, 128] f32 VMEM buffer (32 KB) -------------
# (row_start, lane_start) per segment; segments are disjoint rectangles.
SLAB_ROWS = 64
SLAB_LANES = 128
W1_R, W1_L = 0, 0        # w1        [DIM,   P1 ]  rows  0:64, lanes   0:32
W2_R, W2_L = 0, 32       # w2        [P1,    P2 ]  rows  0:32, lanes  32:64
WC_R, WC_L = 32, 32      # wc^T      [C_MID, C_IN] rows 32:48, lanes  32:36
WH_R, WH_L = 0, 64       # wh / HW   [C_MID, DIM]  rows  0:16, lanes 64:128
G_R, AFF_L = 16, 64      # gamma     [2,     DIM]  rows 16:18, lanes 64:128
BT_R = 18                # beta      [2,     DIM]  rows 18:20, lanes 64:128


# ------------------------------- Pallas kernel --------------------------------
def dsbn_simclr_kernel(dom_ref,   # SMEM (1,)                 int32 : domain_label
                       x_ref,     # VMEM (B*C_IN, HW)         f32   : NCHW input, flattened
                       p_ref,     # VMEM (SLAB_ROWS, 128)     f32   : packed weights
                       z_ref):    # VMEM (B, P2)              f32   : output
    # ---- backbone (simplified): 1x1 conv -> ReLU -> GAP -> linear head
    wc_t = p_ref[WC_R:WC_R + C_MID, WC_L:WC_L + C_IN]           # [C_MID, C_IN]
    cols = []
    for b in range(B):                                           # static unroll, 2-D dots only
        xb = x_ref[b * C_IN:(b + 1) * C_IN, :]                   # [C_IN, HW]  (HW on lanes)
        h1 = jnp.maximum(
            jnp.dot(wc_t, xb, preferred_element_type=jnp.float32), 0.0)   # [C_MID, HW]
        cols.append(jnp.sum(h1, axis=1, keepdims=True))          # lane reduce -> [C_MID, 1]
    poolT = jnp.concatenate(cols, axis=1)                        # [C_MID, B]  (sum; 1/HW folded in wh)

    wh = p_ref[WH_R:WH_R + C_MID, WH_L:WH_L + DIM]               # [C_MID, DIM], pre-scaled by 1/HW
    feat = lax.dot_general(poolT, wh, (((0,), (0,)), ((), ())),
                           preferred_element_type=jnp.float32)   # [B, DIM]  (contracts C_MID)

    # ---- DomainSpecificBatchNorm1d(64, 2): batch stats + per-domain affine
    mean = jnp.mean(feat, axis=0, keepdims=True)                 # [1, DIM]
    var = jnp.mean((feat - mean) ** 2, axis=0, keepdims=True)    # biased var (training mode)
    xn = (feat - mean) * lax.rsqrt(var + EPS)                    # [B, DIM]

    d = dom_ref[0]
    g = p_ref[pl.ds(G_R + d, 1), :][:, AFF_L:AFF_L + DIM]        # dynamic sublane slice, [1, DIM]
    bt = p_ref[pl.ds(BT_R + d, 1), :][:, AFF_L:AFF_L + DIM]      # [1, DIM]
    hbn = xn * g + bt                                            # [B, DIM]

    # ---- projector: Linear(64->32) -> ReLU -> Linear(32->32)   (no biases)
    w1 = p_ref[W1_R:W1_R + DIM, W1_L:W1_L + P1]                  # [DIM, P1]
    w2 = p_ref[W2_R:W2_R + P1, W2_L:W2_L + P2]                   # [P1, P2]
    z1 = jnp.maximum(
        jnp.dot(hbn, w1, preferred_element_type=jnp.float32), 0.0)
    z_ref[...] = jnp.dot(z1, w2, preferred_element_type=jnp.float32)


# ------------------------------- wrappers ---------------------------------------
def pack_params(params):
    """Pack all weights once into a single [64, 128] f32 slab (built at init)."""
    slab = jnp.zeros((SLAB_ROWS, SLAB_LANES), jnp.float32)
    slab = slab.at[W1_R:W1_R + DIM, W1_L:W1_L + P1].set(params['w1'])
    slab = slab.at[W2_R:W2_R + P1, W2_L:W2_L + P2].set(params['w2'])
    slab = slab.at[WC_R:WC_R + C_MID, WC_L:WC_L + C_IN].set(params['wc'].T)
    slab = slab.at[WH_R:WH_R + C_MID, WH_L:WH_L + DIM].set(params['wh'] / HW)  # fold GAP 1/HW
    slab = slab.at[G_R:G_R + 2, AFF_L:AFF_L + DIM].set(params['gamma'])
    slab = slab.at[BT_R:BT_R + 2, AFF_L:AFF_L + DIM].set(params['beta'])
    return slab


@jax.jit
def dsbn_simclr(y_nchw, domain_label, packed_params):
    # NCHW [B, C_IN, H, W] -> [B*C_IN, HW]: pure reshape, NO relayout/transpose.
    x = y_nchw.reshape(B * C_IN, HW)
    vmem = pl.BlockSpec(memory_space=pltpu.MemorySpace.VMEM)
    smem = pl.BlockSpec(memory_space=pltpu.MemorySpace.SMEM)
    return pl.pallas_call(
        dsbn_simclr_kernel,
        out_shape=jax.ShapeDtypeStruct((B, P2), jnp.float32),
        in_specs=[smem, vmem, vmem],
        out_specs=vmem,
    )(domain_label.astype(jnp.int32), x, packed_params)


# ---------------------------- pure-JAX reference --------------------------------
def dsbn_simclr_ref(y_nchw, domain_label, params):
    x = jnp.transpose(y_nchw, (0, 2, 3, 1)).reshape(B, HW, C_IN)
    h1 = jnp.maximum(jnp.einsum('bsc,cm->bsm', x, params['wc']), 0.0)
    pooled = jnp.mean(h1, axis=1)
    feat = pooled @ params['wh']
    mean = jnp.mean(feat, axis=0, keepdims=True)
    var = jnp.mean((feat - mean) ** 2, axis=0, keepdims=True)
    xn = (feat - mean) / jnp.sqrt(var + EPS)
    d = int(domain_label[0])
    hbn = xn * params['gamma'][d:d + 1] + params['beta'][d:d + 1]
    z1 = jnp.maximum(hbn @ params['w1'], 0.0)
    return z1 @ params['w2']


# ------------------------------------ main ---------------------------------------
if __name__ == "__main__":
    key = jax.random.PRNGKey(0)
    k_in, k_wc, k_wh, k_w1, k_w2 = jax.random.split(key, 5)

    # deterministic parameter init (fan-in scaled), BN affine = identity-ish per domain
    params = {
        'wc': jax.random.normal(k_wc, (C_IN, C_MID), jnp.float32) / jnp.sqrt(C_IN),
        'wh': jax.random.normal(k_wh, (C_MID, DIM), jnp.float32) / jnp.sqrt(C_MID),
        'gamma': jnp.ones((2, DIM), jnp.float32),
        'beta': jnp.zeros((2, DIM), jnp.float32),
        'w1': jax.random.normal(k_w1, (DIM, P1), jnp.float32) / jnp.sqrt(DIM),
        'w2': jax.random.normal(k_w2, (P1, P2), jnp.float32) / jnp.sqrt(P1),
    }
    packed = pack_params(params)   # built once at init, reused every call

    y = jax.random.normal(k_in, (B, C_IN, H, W), jnp.float32)   # NCHW like PyTorch
    domain_label = jnp.array([1], dtype=jnp.int32)

    z = dsbn_simclr(y, domain_label, packed)
    z = jax.block_until_ready(z)

    z_ref = dsbn_simclr_ref(y, domain_label, params)
    assert z.shape == (B, P2)
    assert jnp.allclose(z, z_ref, atol=1e-4, rtol=1e-4), (
        f"max abs err {jnp.max(jnp.abs(z - z_ref))}")

    print("KERNEL_OK")
</pallas_src>

<mosaic_0001>
module attributes {stable_mosaic.version = 11 : i64} {
  func.func @dsbn_simclr_kernel(%arg0: memref<1xi32, #tpu.memory_space<smem>>, %arg1: memref<8x256xf32, #tpu.memory_space<vmem>>, %arg2: memref<64x128xf32, #tpu.memory_space<vmem>>, %arg3: memref<2x32xf32, #tpu.memory_space<vmem>>) attributes {dimension_semantics = [], scalar_prefetch = 0 : i64, scratch_operands = 0 : i64, tpu.core_type = #tpu.core_type<tc>} {
    %c32 = arith.constant 32 : index
    %c32_0 = arith.constant 32 : index
    %0 = vector.load %arg2[%c32, %c32_0] : memref<64x128xf32, #tpu.memory_space<vmem>>, vector<16x4xf32>
    %c0 = arith.constant 0 : index
    %c0_1 = arith.constant 0 : index
    %1 = vector.load %arg1[%c0, %c0_1] : memref<8x256xf32, #tpu.memory_space<vmem>>, vector<4x256xf32>
    %cst = arith.constant dense<0.000000e+00> : vector<16x256xf32>
    %2 = tpu.matmul %0, %1, %cst {dimension_numbers = #tpu.dot_dimension_numbers<[1], [0], [0], [1], [0, 0, 1, 1], [], []>} : vector<16x4xf32>, vector<4x256xf32>, vector<16x256xf32> -> vector<16x256xf32>
    %cst_2 = arith.constant 0.000000e+00 : f32
    %3 = vector.broadcast %cst_2 : f32 to vector<16x256xf32>
    %4 = arith.maximumf %2, %3 : vector<16x256xf32>
    %cst_3 = arith.constant dense<0.000000e+00> : vector<16xf32>
    %5 = vector.multi_reduction <add>, %4, %cst_3 [1] : vector<16x256xf32> to vector<16xf32>
    %6 = vector.shape_cast %5 : vector<16xf32> to vector<16x1xf32>
    %c4 = arith.constant 4 : index
    %c0_4 = arith.constant 0 : index
    %7 = vector.load %arg1[%c4, %c0_4] : memref<8x256xf32, #tpu.memory_space<vmem>>, vector<4x256xf32>
    %cst_5 = arith.constant dense<0.000000e+00> : vector<16x256xf32>
    %8 = tpu.matmul %0, %7, %cst_5 {dimension_numbers = #tpu.dot_dimension_numbers<[1], [0], [0], [1], [0, 0, 1, 1], [], []>} : vector<16x4xf32>, vector<4x256xf32>, vector<16x256xf32> -> vector<16x256xf32>
    %cst_6 = arith.constant 0.000000e+00 : f32
    %9 = vector.broadcast %cst_6 : f32 to vector<16x256xf32>
    %10 = arith.maximumf %8, %9 : vector<16x256xf32>
    %cst_7 = arith.constant dense<0.000000e+00> : vector<16xf32>
    %11 = vector.multi_reduction <add>, %10, %cst_7 [1] : vector<16x256xf32> to vector<16xf32>
    %12 = vector.shape_cast %11 : vector<16xf32> to vector<16x1xf32>
    %13 = tpu.concatenate %6, %12 in 1 : vector<16x1xf32>, vector<16x1xf32> -> vector<16x2xf32>
    %c0_8 = arith.constant 0 : index
    %c64 = arith.constant 64 : index
    %14 = vector.load %arg2[%c0_8, %c64] : memref<64x128xf32, #tpu.memory_space<vmem>>, vector<16x64xf32>
    %cst_9 = arith.constant dense<0.000000e+00> : vector<2x64xf32>
    %15 = tpu.matmul %13, %14, %cst_9 {dimension_numbers = #tpu.dot_dimension_numbers<[0], [0], [1], [1], [0, 1, 1, 1], [], []>} : vector<16x2xf32>, vector<16x64xf32>, vector<2x64xf32> -> vector<2x64xf32>
    %cst_10 = arith.constant dense<0.000000e+00> : vector<64xf32>
    %16 = vector.multi_reduction <add>, %15, %cst_10 [0] : vector<2x64xf32> to vector<64xf32>
    %17 = vector.shape_cast %16 : vector<64xf32> to vector<1x64xf32>
    %cst_11 = arith.constant 2.000000e+00 : f32
    %18 = vector.broadcast %cst_11 : f32 to vector<1x64xf32>
    %19 = arith.divf %17, %18 : vector<1x64xf32>
    %20 = vector.broadcast %19 : vector<1x64xf32> to vector<2x64xf32>
    %21 = arith.subf %15, %20 : vector<2x64xf32>
    %22 = arith.mulf %21, %21 : vector<2x64xf32>
    %cst_12 = arith.constant dense<0.000000e+00> : vector<64xf32>
    %23 = vector.multi_reduction <add>, %22, %cst_12 [0] : vector<2x64xf32> to vector<64xf32>
    %24 = vector.shape_cast %23 : vector<64xf32> to vector<1x64xf32>
    %cst_13 = arith.constant 2.000000e+00 : f32
    %25 = vector.broadcast %cst_13 : f32 to vector<1x64xf32>
    %26 = arith.divf %24, %25 : vector<1x64xf32>
    %27 = vector.broadcast %19 : vector<1x64xf32> to vector<2x64xf32>
    %28 = arith.subf %15, %27 : vector<2x64xf32>
    %cst_14 = arith.constant 9.99999974E-6 : f32
    %29 = vector.broadcast %cst_14 : f32 to vector<1x64xf32>
    %30 = arith.addf %26, %29 : vector<1x64xf32>
    %31 = math.rsqrt %30 : vector<1x64xf32>
    %32 = vector.broadcast %31 : vector<1x64xf32> to vector<2x64xf32>
    %33 = arith.mulf %28, %32 : vector<2x64xf32>
    %c0_15 = arith.constant 0 : index
    %34 = memref.load %arg0[%c0_15] : memref<1xi32, #tpu.memory_space<smem>>
    %c16_i32 = arith.constant 16 : i32
    %35 = arith.addi %c16_i32, %34 : i32
    %36 = arith.index_cast %35 : i32 to index
    %c0_16 = arith.constant 0 : index
    %37 = vector.load %arg2[%36, %c0_16] : memref<64x128xf32, #tpu.memory_space<vmem>>, vector<1x128xf32>
    %38 = vector.extract_strided_slice %37 {offsets = [0, 64], sizes = [1, 64], strides = [1, 1]} : vector<1x128xf32> to vector<1x64xf32>
    %c18_i32 = arith.constant 18 : i32
    %39 = arith.addi %c18_i32, %34 : i32
    %40 = arith.index_cast %39 : i32 to index
    %c0_17 = arith.constant 0 : index
    %41 = vector.load %arg2[%40, %c0_17] : memref<64x128xf32, #tpu.memory_space<vmem>>, vector<1x128xf32>
    %42 = vector.extract_strided_slice %41 {offsets = [0, 64], sizes = [1, 64], strides = [1, 1]} : vector<1x128xf32> to vector<1x64xf32>
    %43 = vector.broadcast %38 : vector<1x64xf32> to vector<2x64xf32>
    %44 = arith.mulf %33, %43 : vector<2x64xf32>
    %45 = vector.broadcast %42 : vector<1x64xf32> to vector<2x64xf32>
    %46 = arith.addf %44, %45 : vector<2x64xf32>
    %c0_18 = arith.constant 0 : index
    %c0_19 = arith.constant 0 : index
    %47 = vector.load %arg2[%c0_18, %c0_19] : memref<64x128xf32, #tpu.memory_space<vmem>>, vector<64x32xf32>
    %c0_20 = arith.constant 0 : index
    %c32_21 = arith.constant 32 : index
    %48 = vector.load %arg2[%c0_20, %c32_21] : memref<64x128xf32, #tpu.memory_space<vmem>>, vector<32x32xf32>
    %cst_22 = arith.constant dense<0.000000e+00> : vector<2x32xf32>
    %49 = tpu.matmul %46, %47, %cst_22 {dimension_numbers = #tpu.dot_dimension_numbers<[1], [0], [0], [1], [0, 0, 1, 1], [], []>} : vector<2x64xf32>, vector<64x32xf32>, vector<2x32xf32> -> vector<2x32xf32>
    %cst_23 = arith.constant 0.000000e+00 : f32
    %50 = vector.broadcast %cst_23 : f32 to vector<2x32xf32>
    %51 = arith.maximumf %49, %50 : vector<2x32xf32>
    %cst_24 = arith.constant dense<0.000000e+00> : vector<2x32xf32>
    %52 = tpu.matmul %51, %48, %cst_24 {dimension_numbers = #tpu.dot_dimension_numbers<[1], [0], [0], [1], [0, 0, 1, 1], [], []>} : vector<2x32xf32>, vector<32x32xf32>, vector<2x32xf32> -> vector<2x32xf32>
    %c0_25 = arith.constant 0 : index
    %c0_26 = arith.constant 0 : index
    %53 = vector.load %arg3[%c0_25, %c0_26] : memref<2x32xf32, #tpu.memory_space<vmem>>, vector<2x32xf32>
    tpu.vector_store %arg3[%c0_25, %c0_26], %52 {strides = array<i32>} : memref<2x32xf32, #tpu.memory_space<vmem>>, vector<2x32xf32>,
    return
  }
}

</mosaic_0001>

<llo_original>
// kernel: dsbn_simclr.1
$region0: #{dsbn_simclr.1}
  #allocation0 [shape = 'u32[]', space=smem, size = 0x4, offset = 0x4, fixed_abs, tag = 'smem constant byte address 0x4 - core index']
  #allocation1 [shape = 'u32[72,128]{1,0:T(1,128)}', space=vmem, size = 0x9000, scoped, tag = 'internal scratch']
  #allocation2 [shape = 's32[1]{0:T(128)S(6)}', space=smem, size = 0x200, scoped, tag = 'scoped memory for dsbn_simclr.1']
  %s0 = inlined_call_operand.<no memory space> [shape: s32[1], index: 0, kind: input, shape index: {}]
  %s1 = inlined_call_operand.vmem [shape: f32[8,256], index: 1, kind: input, shape index: {}]
  %s2 = inlined_call_operand.vmem [shape: f32[64,128], index: 2, kind: input, shape index: {}]
  %s3 = inlined_call_operand.hbm [shape: f32[2,32], index: 3, kind: output, shape index: {}]
  %s4 = sld [smem:[#allocation0]]
  $region22: #{dsbn_simclr.1} parent=0
    _
  %s6 = ssub.s32 1, %s4
  %s7 = scalar_select 0, %s6, %s4
  %8 = sst [smem:[#allocation2]] %s0
  $region1: #{dsbn_simclr.1} parent=0
    #allocation3 [shape = 'u8[1024]{0}', space=vmem, size = 0x400, scoped, tag = 'output window, operand 0, single buffered']
    #allocation4 [shape = 's32[1]{0}', space=sflag, size = 0x4, scoped, tag = 'scoped memory for dsbn_simclr.1']
    %9 = vsyncpa [#allocation4], 0
    // Predicated region
    $region2: #{dsbn_simclr.1} parent=1 // pred_check
      _
    $region3: #{dsbn_simclr.1} parent=1 // pred_check_branch
      %11 = sbr.rel (0) target = $region5
    $region4: #{dsbn_simclr.1} parent=1 // pred_region
      _
    $region5: #{dsbn_simclr.1} parent=1 // pred_fallthru
      _
    // Predicated region
    $region6: #{dsbn_simclr.1} parent=1 // pred_check
      _
    $region7: #{dsbn_simclr.1} parent=1 // pred_check_branch
      %13 = sbr.rel (0) target = $region9
    $region8: #{dsbn_simclr.1} parent=1 // pred_region
      _
    $region9: #{dsbn_simclr.1} parent=1 // pred_fallthru
      _
    // Predicated region
    $region10: #{dsbn_simclr.1} parent=1 // pred_check
      _
    $region11: #{dsbn_simclr.1} parent=1 // pred_check_branch
      %15 = sbr.rel (0) target = $region13
    $region12: #{dsbn_simclr.1} parent=1 // pred_region
      _
    $region13: #{dsbn_simclr.1} parent=1 // pred_fallthru
      _
    %v16 = vld [vmem:[%s2 + $0x20] sm:$0xff]
    %v17 = vld [vmem:[%s2 + $0x28] sm:$0xff]
    %v18 = vld [vmem:[%s1] sm:$0xf]
    %v19 = vld [vmem:[%s1 + $0x8] sm:$0xf]
    %22 = vrot.lane.b32.xlu0 %v16, 96
    %v23 = vpop.permute.xlu0 %22
    %24 = vrot.lane.b32.xlu0 %v17, 96
    %v25 = vpop.permute.xlu0 %24
    %vm26 = vcmask 31744
    %v27 = vsel %vm26, %v23, 0
    %v29 = vsel %vm26, %v25, 0
    %vm31 = vcmask 1043456
    %v33 = vsel %vm31, %v18, 0
    %v36 = vsel %vm31, %v19, 0
    %38 = vmatpush.msra.mxu0 0.0
    %39 = vmatpush.msra.mxu0 0.0
    %40 = vmatpush.msra.mxu0 0.0
    %41 = vmatpush.msra.mxu0 0.0
    %42 = vmatpush.msra.mxu0 0.0
    %43 = vmatpush.msra.mxu0 0.0
    %44 = vmatpush.msra.mxu0 0.0
    %45 = vmatpush.msra.mxu0 0.0
    %46 = vmatpush.msra.mxu0 0.0
    %47 = vmatpush.msra.mxu0 0.0
    %48 = vmatpush.msra.mxu0 0.0
    %49 = vmatpush.msra.mxu0 0.0
    %50 = vmatpush.msra.mxu0 0.0
    %51 = vmatpush.msra.mxu0 0.0
    %52 = vmatpush.msra.mxu0 0.0
    %53 = vmatpush.msra.mxu0 %v33
    %54 = vmatmul.f32.gmra.mxu0 %v27
    %v55 = vpop.f32.mrf.mxu0
    %v56 = vadd.f32 0.0, %v55
    %57 = vmatmul.f32.gmra.mxu0 %v29
    %v58 = vpop.f32.mrf.mxu0
    %v59 = vadd.f32 0.0, %v58
    %60 = vdwg.mxu0
    %61 = vmatpush.msra.mxu0 0.0
    %62 = vmatpush.msra.mxu0 0.0
    %63 = vmatpush.msra.mxu0 0.0
    %64 = vmatpush.msra.mxu0 0.0
    %65 = vmatpush.msra.mxu0 0.0
    %66 = vmatpush.msra.mxu0 0.0
    %67 = vmatpush.msra.mxu0 0.0
    %68 = vmatpush.msra.mxu0 0.0
    %69 = vmatpush.msra.mxu0 0.0
    %70 = vmatpush.msra.mxu0 0.0
    %71 = vmatpush.msra.mxu0 0.0
    %72 = vmatpush.msra.mxu0 0.0
    %73 = vmatpush.msra.mxu0 0.0
    %74 = vmatpush.msra.mxu0 0.0
    %75 = vmatpush.msra.mxu0 0.0
    %76 = vmatpush.msra.mxu0 %v36
    %77 = vmatmul.f32.gmra.mxu0 %v27
    %v78 = vpop.f32.mrf.mxu0
    %v79 = vadd.f32 0.0, %v78
    %80 = vmatmul.f32.gmra.mxu0 %v29
    %v81 = vpop.f32.mrf.mxu0
    %v82 = vadd.f32 0.0, %v81
    %83 = vdwg.mxu0
    %v84 = vmax.f32 %v56, 0.0
    %v85 = vmax.f32 %v79, 0.0
    %v86 = vmax.f32 %v59, 0.0
    %v87 = vmax.f32 %v82, 0.0
    %v88 = vadd.f32 %v84, %v85
    %89 = vadd.xlane.f32.xlu0 %v88
    %v90 = vpop.xlane.xlu0 %89
    %v91 = vadd.f32 %v86, %v87
    %92 = vadd.xlane.f32.xlu0 %v91
    %v93 = vpop.xlane.xlu0 %92
    %v94 = vld [vmem:[%s1] sm:$0xf0]
    %v95 = vld [vmem:[%s1 + $0x8] sm:$0xf0]
    %v98 = vrot.slane %v94, 4
    %v99 = vrot.slane %v95, 4
    %v100 = vsel %vm31, %v98, 0
    %v102 = vsel %vm31, %v99, 0
    %104 = vmatpush.msra.mxu0 0.0
    %105 = vmatpush.msra.mxu0 0.0
    %106 = vmatpush.msra.mxu0 0.0
    %107 = vmatpush.msra.mxu0 0.0
    %108 = vmatpush.msra.mxu0 0.0
    %109 = vmatpush.msra.mxu0 0.0
    %110 = vmatpush.msra.mxu0 0.0
    %111 = vmatpush.msra.mxu0 0.0
    %112 = vmatpush.msra.mxu0 0.0
    %113 = vmatpush.msra.mxu0 0.0
    %114 = vmatpush.msra.mxu0 0.0
    %115 = vmatpush.msra.mxu0 0.0
    %116 = vmatpush.msra.mxu0 0.0
    %117 = vmatpush.msra.mxu0 0.0
    %118 = vmatpush.msra.mxu0 0.0
    %119 = vmatpush.msra.mxu0 %v100
    %120 = vmatmul.f32.gmra.mxu0 %v27
    %v121 = vpop.f32.mrf.mxu0
    %v122 = vadd.f32 0.0, %v121
    %123 = vmatmul.f32.gmra.mxu0 %v29
    %v124 = vpop.f32.mrf.mxu0
    %v125 = vadd.f32 0.0, %v124
    %126 = vdwg.mxu0
    %127 = vmatpush.msra.mxu0 0.0
    %128 = vmatpush.msra.mxu0 0.0
    %129 = vmatpush.msra.mxu0 0.0
    %130 = vmatpush.msra.mxu0 0.0
    %131 = vmatpush.msra.mxu0 0.0
    %132 = vmatpush.msra.mxu0 0.0
    %133 = vmatpush.msra.mxu0 0.0
    %134 = vmatpush.msra.mxu0 0.0
    %135 = vmatpush.msra.mxu0 0.0
    %136 = vmatpush.msra.mxu0 0.0
    %137 = vmatpush.msra.mxu0 0.0
    %138 = vmatpush.msra.mxu0 0.0
    %139 = vmatpush.msra.mxu0 0.0
    %140 = vmatpush.msra.mxu0 0.0
    %141 = vmatpush.msra.mxu0 0.0
    %142 = vmatpush.msra.mxu0 %v102
    %143 = vmatmul.f32.gmra.mxu0 %v27
    %v144 = vpop.f32.mrf.mxu0
    %v145 = vadd.f32 0.0, %v144
    %146 = vmatmul.f32.gmra.mxu0 %v29
    %v147 = vpop.f32.mrf.mxu0
    %v148 = vadd.f32 0.0, %v147
    %149 = vdwg.mxu0
    %v150 = vmax.f32 %v122, 0.0
    %v151 = vmax.f32 %v145, 0.0
    %v152 = vmax.f32 %v125, 0.0
    %v153 = vmax.f32 %v148, 0.0
    %v154 = vadd.f32 %v150, %v151
    %155 = vadd.xlane.f32.xlu0 %v154
    %v156 = vpop.xlane.xlu0 %155
    %v157 = vadd.f32 %v152, %v153
    %158 = vadd.xlane.f32.xlu0 %v157
    %v159 = vpop.xlane.xlu0 %158
    %vm160 = vcmask 7168
    %v161 = vsel %vm160, %v90, %v156
    %v162 = vsel %vm160, %v93, %v159
    %v163 = vld [vmem:[%s2] sm:$0xff]
    %v164 = vld [vmem:[%s2 + $0x8] sm:$0xff]
    %165 = vxpose.xlu0.b32.start [1/16] %v161, 128
    %166 = vxpose.xlu0.b32.cont [2/16] %v162, 128
    %167 = vxpose.xlu0.b32.cont [3/16] 0.0, 128
    %168 = vxpose.xlu0.b32.cont [4/16] 0.0, 128
    %169 = vxpose.xlu0.b32.cont [5/16] 0.0, 128
    %170 = vxpose.xlu0.b32.cont [6/16] 0.0, 128
    %171 = vxpose.xlu0.b32.cont [7/16] 0.0, 128
    %172 = vxpose.xlu0.b32.cont [8/16] 0.0, 128
    %173 = vxpose.xlu0.b32.cont [9/16] 0.0, 128
    %174 = vxpose.xlu0.b32.cont [10/16] 0.0, 128
    %175 = vxpose.xlu0.b32.cont [11/16] 0.0, 128
    %176 = vxpose.xlu0.b32.cont [12/16] 0.0, 128
    %177 = vxpose.xlu0.b32.cont [13/16] 0.0, 128
    %178 = vxpose.xlu0.b32.cont [14/16] 0.0, 128
    %179 = vxpose.xlu0.b32.cont [15/16] 0.0, 128
    %180 = vxpose.xlu0.b32.end [16/16] 0.0, 128
    %v181 = vpop.trf.xlu0
    %v182 = vpop.trf.xlu0
    %v183 = vpop.trf.xlu0
    %v184 = vpop.trf.xlu0
    %v185 = vpop.trf.xlu0
    %v186 = vpop.trf.xlu0
    %v187 = vpop.trf.xlu0
    %v188 = vpop.trf.xlu0
    %v189 = vpop.trf.xlu0
    %v190 = vpop.trf.xlu0
    %v191 = vpop.trf.xlu0
    %v192 = vpop.trf.xlu0
    %v193 = vpop.trf.xlu0
    %v194 = vpop.trf.xlu0
    %v195 = vpop.trf.xlu0
    %v196 = vpop.trf.xlu0
    %199 = vrot.lane.b32.xlu0 %v163, 64
    %v200 = vpop.permute.xlu0 %199
    %201 = vrot.lane.b32.xlu0 %v164, 64
    %v202 = vpop.permute.xlu0 %201
    %vm205 = vcmask 130048
    %v207 = vsel %vm205, %v181, 0
    %209 = vmatpush.msra.mxu0 0.0
    %210 = vmatpush.msra.mxu0 0.0
    %211 = vmatpush.msra.mxu0 0.0
    %212 = vmatpush.msra.mxu0 0.0
    %213 = vmatpush.msra.mxu0 0.0
    %214 = vmatpush.msra.mxu0 0.0
    %215 = vmatpush.msra.mxu0 0.0
    %216 = vmatpush.msra.mxu0 0.0
    %217 = vmatpush.msra.mxu0 0.0
    %218 = vmatpush.msra.mxu0 0.0
    %219 = vmatpush.msra.mxu0 0.0
    %220 = vmatpush.msra.mxu0 0.0
    %221 = vmatpush.msra.mxu0 0.0
    %222 = vmatpush.msra.mxu0 0.0
    %223 = vmatpush.msra.mxu0 %v202
    %224 = vmatpush.msra.mxu0 %v200
    %225 = vmatmul.f32.gmra.mxu0 %v207
    %v226 = vpop.f32.mrf.mxu0
    %v227 = vadd.f32 0.0, %v226
    %228 = vdwg.mxu0
    %vm229 = vcmask 517120
    %v230 = vsel %vm229, %v227, 0.0
    %v231 = vrot.slane %v230, 4
    %v232 = vadd.f32 %v230, %v231
    %v233 = vrot.slane %v232, 2
    %v234 = vadd.f32 %v232, %v233
    %v235 = vrot.slane %v234, 1
    %v236 = vadd.f32 %v234, %v235
    %v237 = vrcp.pop 2.0
    %v238 = vmul.f32 2.0, %v237
    %v239 = vsub.f32 1.0, %v238
    %v240 = vmul.f32 %v237, %v239
    %v241 = vadd.f32 %v237, %v240
    %vm242 = vweird.f32 %v237
    %v243 = vsel %vm242, %v237, %v241
    %v244 = vmul.f32 %v236, %v243
    %v245 = vsub.f32 %v227, %v244
    %v246 = vmul.f32 %v245, %v245
    %v247 = vsel %vm229, %v246, 0.0
    %v248 = vrot.slane %v247, 4
    %v249 = vadd.f32 %v247, %v248
    %v250 = vrot.slane %v249, 2
    %v251 = vadd.f32 %v249, %v250
    %v252 = vrot.slane %v251, 1
    %v253 = vadd.f32 %v251, %v252
    %v254 = vmul.f32 %v253, %v243
    %v255 = vadd.f32 %v254, 1e-05
    %v256 = vrsqrt.pop %v255
    %v257 = vmul.f32 %v256, %v255
    %v258 = vmul.f32 %v257, %v256
    %v259 = vmul.f32 0.5, %v258
    %v260 = vsub.f32 1.5, %v259
    %v261 = vmul.f32 %v256, %v260
    %vm262 = vweird.f32 %v255
    %vm263 = vweird.f32 %v256
    %vm264 = vmor %vm262, %vm263
    %v265 = vsel %vm264, %v256, %v261
    %v266 = vmul.f32 %v245, %v265
    %s267 = sld [smem:[#allocation2]]
    %s268 = sadd.s32 %s267, 16
    %s269 = scalar_lea.vmem %s2, %s268
    %v270 = vld [vmem:[%s269] sm:$0x1]
    %s271 = sadd.s32 %s267, 18
    %s272 = scalar_lea.vmem %s2, %s271
    %v273 = vld [vmem:[%s272] sm:$0x1]
    %v274 = vperm.slane %v270, 0
    %276 = vrot.lane.b32.xlu0 %v274, 64
    %v277 = vpop.permute.xlu0 %276
    %v279 = vmul.f32 %v266, %v277
    %v280 = vperm.slane %v273, 0
    %282 = vrot.lane.b32.xlu0 %v280, 64
    %v283 = vpop.permute.xlu0 %282
    %v285 = vadd.f32 %v279, %v283
    %v286 = vld [vmem:[%s2] sm:$0xff]
    %v287 = vld [vmem:[%s2 + $0x8] sm:$0xff]
    %v288 = vld [vmem:[%s2 + $0x10] sm:$0xff]
    %v289 = vld [vmem:[%s2 + $0x18] sm:$0xff]
    %v290 = vld [vmem:[%s2 + $0x20] sm:$0xff]
    %v291 = vld [vmem:[%s2 + $0x28] sm:$0xff]
    %v292 = vld [vmem:[%s2 + $0x30] sm:$0xff]
    %v293 = vld [vmem:[%s2 + $0x38] sm:$0xff]
    %v294 = vld [vmem:[%s2] sm:$0xff]
    %v295 = vld [vmem:[%s2 + $0x8] sm:$0xff]
    %v296 = vld [vmem:[%s2 + $0x10] sm:$0xff]
    %v297 = vld [vmem:[%s2 + $0x18] sm:$0xff]
    %vm298 = vcmask 523264
    %v300 = vsel %vm298, %v285, 0
    %302 = vmatpush.msra.mxu0 0.0
    %303 = vmatpush.msra.mxu0 0.0
    %304 = vmatpush.msra.mxu0 0.0
    %305 = vmatpush.msra.mxu0 0.0
    %306 = vmatpush.msra.mxu0 0.0
    %307 = vmatpush.msra.mxu0 0.0
    %308 = vmatpush.msra.mxu0 0.0
    %309 = vmatpush.msra.mxu0 0.0
    %310 = vmatpush.msra.mxu0 %v293
    %311 = vmatpush.msra.mxu0 %v292
    %312 = vmatpush.msra.mxu0 %v291
    %313 = vmatpush.msra.mxu0 %v290
    %314 = vmatpush.msra.mxu0 %v289
    %315 = vmatpush.msra.mxu0 %v288
    %316 = vmatpush.msra.mxu0 %v287
    %317 = vmatpush.msra.mxu0 %v286
    %318 = vmatmul.f32.gmra.mxu0 %v300
    %v319 = vpop.f32.mrf.mxu0
    %v320 = vadd.f32 0.0, %v319
    %321 = vdwg.mxu0
    %v322 = vmax.f32 %v320, 0.0
    %327 = vrot.lane.b32.xlu0 %v294, 96
    %v328 = vpop.permute.xlu0 %327
    %329 = vrot.lane.b32.xlu0 %v295, 96
    %v330 = vpop.permute.xlu0 %329
    %331 = vrot.lane.b32.xlu0 %v296, 96
    %v332 = vpop.permute.xlu0 %331
    %333 = vrot.lane.b32.xlu0 %v297, 96
    %v334 = vpop.permute.xlu0 %333
    %vm339 = vcmask 261120
    %v341 = vsel %vm339, %v322, 0
    %343 = vmatpush.msra.mxu0 0.0
    %344 = vmatpush.msra.mxu0 0.0
    %345 = vmatpush.msra.mxu0 0.0
    %346 = vmatpush.msra.mxu0 0.0
    %347 = vmatpush.msra.mxu0 0.0
    %348 = vmatpush.msra.mxu0 0.0
    %349 = vmatpush.msra.mxu0 0.0
    %350 = vmatpush.msra.mxu0 0.0
    %351 = vmatpush.msra.mxu0 0.0
    %352 = vmatpush.msra.mxu0 0.0
    %353 = vmatpush.msra.mxu0 0.0
    %354 = vmatpush.msra.mxu0 0.0
    %355 = vmatpush.msra.mxu0 %v334
    %356 = vmatpush.msra.mxu0 %v332
    %357 = vmatpush.msra.mxu0 %v330
    %358 = vmatpush.msra.mxu0 %v328
    %359 = vmatmul.f32.gmra.mxu0 %v341
    %v360 = vpop.f32.mrf.mxu0
    %v361 = vadd.f32 0.0, %v360
    %362 = vdwg.mxu0
    %vm363 = vcmask 254976
    %364 = vst.msk [vmem:[#allocation3] sm:$0x3] %vm363, %v361
    // Predicated region
    $region14: #{dsbn_simclr.1} parent=1 // pred_check
      _
    $region15: #{dsbn_simclr.1} parent=1 // pred_check_branch
      %366 = sbr.rel (0) target = $region17
    $region16: #{dsbn_simclr.1} parent=1 // pred_region
      %368 = vsyncadd [#allocation4], 0
      %s370 = sshll.u32 [#allocation3], 4
      %s371 = int_to_ptr.vmem [resolvable:$true] %s370
      %s372 = sshll.u32 %s3, 4
      %s373 = int_to_ptr.hbm [resolvable:$true] %s372
      %375 = dma.vmem_to_hbm [thread:$0]  %s371, 32, %s373, [#allocation4]
    $region17: #{dsbn_simclr.1} parent=1 // pred_fallthru
      _
    // Predicated region
    $region18: #{dsbn_simclr.1} parent=1 // pred_check
      _
    $region19: #{dsbn_simclr.1} parent=1 // pred_check_branch
      %377 = sbr.rel (0) target = $region21
    $region20: #{dsbn_simclr.1} parent=1 // pred_region
      %379 = dma.done [#allocation4], 32
    $region21: #{dsbn_simclr.1} parent=1 // pred_fallthru
      _
    %380 = vsyncpa [#allocation4], 1

</llo_original>
